<compile_context>
chip_gen: v7x
topology: tpu7x:2x2x1
jax: 0.10.0
libtpu: 0.0.40
codegen_flags: <defaults>
</compile_context>

<pallas_src>
import math

import jax
import jax.numpy as jnp
from jax.experimental import pallas as pl
from jax.experimental.pallas import tpu as pltpu


def _drop_path_kernel(scale_ref, x_ref, o_ref):
    # scale_ref: (TB, 1) f32 per-sample multiplier = mask / keep_prob (VMEM)
    # x_ref / o_ref: (TB, TF) tile of the flattened activations (VMEM)
    s = scale_ref[...].astype(x_ref.dtype)       # stay in x.dtype on the VPU
    o_ref[...] = x_ref[...] * s                  # lane-broadcast multiply


def _choose_block(B, F, itemsize):
    """Pick a (TB, TF) block ~2 MiB per buffer, legal under the (8,128) rule."""
    target_elems = max(1, (2 * 1024 * 1024) // itemsize)   # ~2 MiB / buffer

    # --- feature (lane) tile --------------------------------------------------
    if F % 128 != 0:
        # Block dim must equal the full array dim when not 128-aligned.
        # TODO(synk): pad F to a multiple of 128 for huge unaligned samples.
        tf = F
    else:
        min_rows = B if B <= 8 else 8            # smallest legal row tile
        tf_budget = max(128, target_elems // max(1, min_rows))
        tf = max(128, min(F, (tf_budget // 128) * 128))

    # --- batch / row (sublane) tile -------------------------------------------
    rows = max(1, target_elems // tf)
    if rows >= B or B <= 8:
        tb = B                                   # whole batch dim (always legal)
    else:
        tb = max(8, (rows // 8) * 8)             # multiple of 8; partial tail OK
    return tb, tf


def drop_path_forward(x, drop_prob=0.0, training=False, *, key=None):
    """Stochastic-depth forward. x: (B, ...)."""
    # Identity path, exactly like the PyTorch early return.
    if drop_prob is None or drop_prob == 0.0 or not training:
        return x
    if key is None:
        raise ValueError("training DropPath requires a PRNG key")
    assert x.ndim >= 1, "expected a batched tensor (B, ...)"

    B = x.shape[0]
    keep_prob = 1.0 - float(drop_prob)

    # Per-sample binary mask, same formula as the PyTorch reference:
    # floor(keep_prob + U[0,1)) in {0, 1}, folded with 1/keep_prob into a single
    # f32 multiplier per sample (one scalar per batch element, never (B,N,C)).
    rnd = jax.random.uniform(key, (B,), dtype=jnp.float32)
    mask = jnp.floor(keep_prob + rnd)                       # (B,) of {0., 1.}
    scale = (mask / keep_prob).astype(jnp.float32).reshape(B, 1)

    orig_shape = x.shape
    F = int(math.prod(orig_shape[1:])) if x.ndim > 1 else 1
    x2 = x.reshape(B, F)

    itemsize = jnp.dtype(x.dtype).itemsize
    tb, tf = _choose_block(B, F, itemsize)
    grid = (pl.cdiv(B, tb), pl.cdiv(F, tf))

    out = pl.pallas_call(
        _drop_path_kernel,
        out_shape=jax.ShapeDtypeStruct((B, F), x.dtype),
        grid_spec=pltpu.PrefetchScalarGridSpec(
            num_scalar_prefetch=0,
            grid=grid,
            in_specs=[
                # per-sample multipliers: (TB, 1) rows matching the x row tile
                pl.BlockSpec((tb, 1), lambda i, j: (i, 0)),
                # flattened activations: (TB, TF) lane-dense streaming tile
                pl.BlockSpec((tb, tf), lambda i, j: (i, j)),
            ],
            out_specs=pl.BlockSpec((tb, tf), lambda i, j: (i, j)),
        ),
        compiler_params=pltpu.CompilerParams(
            # Fully elementwise: both axes shard across TensorCores (v7x).
            dimension_semantics=("parallel", "parallel"),
            # ~8 MiB actual footprint; 32 MiB is safe headroom on every chip.
            vmem_limit_bytes=32 * 1024 * 1024,
        ),
    )(scale, x2)

    return out.reshape(orig_shape)


def drop_path_reference(x, drop_prob, training, key):
    """Pure-JAX reference mirroring the PyTorch `drop_path` exactly."""
    if drop_prob is None or drop_prob == 0.0 or not training:
        return x
    keep_prob = 1.0 - float(drop_prob)
    B = x.shape[0]
    rnd = jax.random.uniform(key, (B,), dtype=jnp.float32)
    mask = jnp.floor(keep_prob + rnd)                       # (B,)
    bshape = (B,) + (1,) * (x.ndim - 1)
    return (x / jnp.asarray(keep_prob, x.dtype)) * mask.reshape(bshape).astype(x.dtype)


if __name__ == "__main__":
    drop_prob = 0.25
    key = jax.random.PRNGKey(0)
    kx, kmask, kx2 = jax.random.split(key, 3)

    # Primary demo: ViT-like activations (batch=2, seq=8, hidden=128).
    x = jax.random.normal(kx, (2, 8, 128), dtype=jnp.float32)

    # --- training path: stochastic depth active (kernel runs) ---
    out = drop_path_forward(x, drop_prob, training=True, key=kmask)
    out = jax.block_until_ready(out)
    ref = drop_path_reference(x, drop_prob, training=True, key=kmask)
    assert out.shape == x.shape and out.dtype == x.dtype
    assert jnp.allclose(out, ref, atol=1e-6, rtol=1e-6), "mismatch vs reference (f32)"

    # --- bf16 path: multiply stays in bf16 inside the kernel ---
    xb = x.astype(jnp.bfloat16)
    outb = jax.block_until_ready(drop_path_forward(xb, drop_prob, training=True, key=kmask))
    refb = drop_path_reference(xb, drop_prob, training=True, key=kmask)
    assert outb.dtype == jnp.bfloat16
    assert jnp.allclose(outb.astype(jnp.float32), refb.astype(jnp.float32),
                        atol=2e-2, rtol=2e-2), "mismatch vs reference (bf16)"

    # --- non-128-aligned feature size exercises the full-row fallback block ---
    y = jax.random.normal(kx2, (2, 3, 10), dtype=jnp.float32)
    outy = jax.block_until_ready(drop_path_forward(y, drop_prob, training=True, key=kmask))
    refy = drop_path_reference(y, drop_prob, training=True, key=kmask)
    assert jnp.allclose(outy, refy, atol=1e-6, rtol=1e-6), "mismatch vs reference (unaligned)"

    # --- eval / drop_prob == 0 paths are exact identity (like PyTorch) ---
    assert jnp.array_equal(drop_path_forward(x, drop_prob, training=False), x)
    assert jnp.array_equal(drop_path_forward(x, 0.0, training=True, key=kmask), x)

    print("KERNEL_OK")
</pallas_src>

<mosaic_0001>
module attributes {stable_mosaic.version = 11 : i64} {
  func.func @_drop_path_kernel(%arg0: i32, %arg1: i32, %arg2: memref<2x1xf32, #tpu.memory_space<vmem>>, %arg3: memref<2x1024xf32, #tpu.memory_space<vmem>>, %arg4: memref<2x1024xf32, #tpu.memory_space<vmem>>) attributes {dimension_semantics = [#tpu.dimension_semantics<parallel>, #tpu.dimension_semantics<parallel>], iteration_bounds = array<i64: 1, 1>, scalar_prefetch = 0 : i64, scratch_operands = 0 : i64, tpu.core_type = #tpu.core_type<tc>, window_params = [{transform_indices = @transform_0, window_bounds = array<i64: 2, 1>}, {transform_indices = @transform_1, window_bounds = array<i64: 2, 1024>}, {transform_indices = @transform_2, window_bounds = array<i64: 2, 1024>}]} {
    %c0 = arith.constant 0 : index
    %c0_0 = arith.constant 0 : index
    %0 = vector.load %arg2[%c0, %c0_0] : memref<2x1xf32, #tpu.memory_space<vmem>>, vector<2x1xf32>
    %c0_1 = arith.constant 0 : index
    %c0_2 = arith.constant 0 : index
    %1 = vector.load %arg3[%c0_1, %c0_2] : memref<2x1024xf32, #tpu.memory_space<vmem>>, vector<2x1024xf32>
    %2 = vector.broadcast %0 : vector<2x1xf32> to vector<2x1024xf32>
    %3 = arith.mulf %1, %2 : vector<2x1024xf32>
    %c0_3 = arith.constant 0 : index
    %c0_4 = arith.constant 0 : index
    %4 = vector.load %arg4[%c0_3, %c0_4] : memref<2x1024xf32, #tpu.memory_space<vmem>>, vector<2x1024xf32>
    tpu.vector_store %arg4[%c0_3, %c0_4], %3 {strides = array<i32>} : memref<2x1024xf32, #tpu.memory_space<vmem>>, vector<2x1024xf32>,
    return
  }
  func.func @transform_0(%arg0: i32, %arg1: i32) -> (i32, i32) {
    %c0_i32 = arith.constant 0 : i32
    %c0_i32_0 = arith.constant 0 : i32
    return %arg0, %c0_i32 : i32, i32
  }
  func.func @transform_1(%arg0: i32, %arg1: i32) -> (i32, i32) {
    %c0_i32 = arith.constant 0 : i32
    return %arg0, %arg1 : i32, i32
  }
  func.func @transform_2(%arg0: i32, %arg1: i32) -> (i32, i32) {
    %c0_i32 = arith.constant 0 : i32
    return %arg0, %arg1 : i32, i32
  }
}

</mosaic_0001>

<llo_original>
// kernel: tpu_custom_call.1
$region0: #{tpu_custom_call.1}
  #allocation0 [shape = 'u32[]', space=smem, size = 0x4, offset = 0x4, fixed_abs, tag = 'smem constant byte address 0x4 - core index']
  #allocation1 [shape = 'u32[144,128]{1,0:T(1,128)}', space=vmem, size = 0x12000, scoped, tag = 'internal scratch']
  %s0 = inlined_call_operand.vmem [shape: f32[2,1], index: 0, kind: input, shape index: {}]
  %s1 = inlined_call_operand.hbm [shape: f32[2,1024], index: 1, kind: input, shape index: {}]
  %s2 = inlined_call_operand.hbm [shape: f32[2,1024], index: 2, kind: output, shape index: {}]
  %s3 = sld [smem:[#allocation0]]
  $region22: #{tpu_custom_call.1} parent=0
    _
  %s5 = ssub.s32 1, %s3
  %s6 = scalar_select 0, %s5, %s3
  $region1: #{tpu_custom_call.1} parent=0
    #allocation2 [shape = 'u8[8192]{0}', space=vmem, size = 0x2000, scoped, tag = 'input window, operand 1, single buffered']
    #allocation3 [shape = 's32[1]{0}', space=sflag, size = 0x4, scoped, tag = 'scoped memory for tpu_custom_call.1']
    #allocation4 [shape = 's32[1]{0}', space=sflag, size = 0x4, scoped, tag = 'scoped memory for tpu_custom_call.1']
    #allocation5 [shape = 'u8[8192]{0}', space=vmem, size = 0x2000, scoped, tag = 'output window, operand 0, single buffered']
    %7 = vsyncpa [#allocation3], 0
    %8 = vsyncpa [#allocation4], 0
    // Predicated region
    $region2: #{tpu_custom_call.1} parent=1 // pred_check
      _
    $region3: #{tpu_custom_call.1} parent=1 // pred_check_branch
      %10 = sbr.rel (0) target = $region5
    $region4: #{tpu_custom_call.1} parent=1 // pred_region
      _
    $region5: #{tpu_custom_call.1} parent=1 // pred_fallthru
      _
    // Predicated region
    $region6: #{tpu_custom_call.1} parent=1 // pred_check
      _
    $region7: #{tpu_custom_call.1} parent=1 // pred_check_branch
      %12 = sbr.rel (0) target = $region9
    $region8: #{tpu_custom_call.1} parent=1 // pred_region
      %s14 = ssub.s32 256, 256
      %15 = vsyncadd [#allocation3], %s14
      %s17 = sshll.u32 [#allocation2], 4
      %s18 = int_to_ptr.vmem [resolvable:$true] %s17
      %20 = dma.hbm_to_vmem [thread:$0]  %s1, 256, %s18, [#allocation3]
    $region9: #{tpu_custom_call.1} parent=1 // pred_fallthru
      _
    // Predicated region
    $region10: #{tpu_custom_call.1} parent=1 // pred_check
      _
    $region11: #{tpu_custom_call.1} parent=1 // pred_check_branch
      %22 = sbr.rel (0) target = $region13
    $region12: #{tpu_custom_call.1} parent=1 // pred_region
      %23 = dma.done [#allocation3], 256
    $region13: #{tpu_custom_call.1} parent=1 // pred_fallthru
      _
    %v24 = vld [vmem:[%s0] sm:$0x3]
    %v25 = vld [vmem:[#allocation2] sm:$0xff]
    %v26 = vld [vmem:[#allocation2 + $0x8] sm:$0xff]
    %28 = vset.pattern.permute.xlu0 0
    %29 = vperm.xlu0 %28, %v24
    %v30 = vpop.permute.xlu0 %29
    %v32 = vunpack.c.l.s4 269488144
    %v33 = vunpack.c.0.s8 %v32
    %v34 = vlaneseq
    %v35 = vshrl.u32 %v34, 7
    %v36 = vsub.s32 %v33, %v35
    %v37 = vrot.slane %v30, %v36
    %v39 = vmul.f32 %v25, %v37
    %v40 = vmul.f32 %v26, %v37
    %41 = vst [vmem:[#allocation5] sm:$0xff] %v39
    %42 = vst [vmem:[#allocation5 + $0x8] sm:$0xff] %v40
    // Predicated region
    $region14: #{tpu_custom_call.1} parent=1 // pred_check
      _
    $region15: #{tpu_custom_call.1} parent=1 // pred_check_branch
      %44 = sbr.rel (0) target = $region17
    $region16: #{tpu_custom_call.1} parent=1 // pred_region
      %s46 = ssub.s32 256, 256
      %47 = vsyncadd [#allocation4], %s46
      %s49 = sshll.u32 [#allocation5], 4
      %s50 = int_to_ptr.vmem [resolvable:$true] %s49
      %52 = dma.vmem_to_hbm [thread:$0]  %s50, 256, %s2, [#allocation4]
    $region17: #{tpu_custom_call.1} parent=1 // pred_fallthru
      _
    // Predicated region
    $region18: #{tpu_custom_call.1} parent=1 // pred_check
      _
    $region19: #{tpu_custom_call.1} parent=1 // pred_check_branch
      %54 = sbr.rel (0) target = $region21
    $region20: #{tpu_custom_call.1} parent=1 // pred_region
      %55 = dma.done [#allocation4], 256
    $region21: #{tpu_custom_call.1} parent=1 // pred_fallthru
      _
    %56 = vsyncpa [#allocation3], 1
    %57 = vsyncpa [#allocation4], 1

</llo_original>
